<compile_context>
chip_gen: v7x
topology: tpu7x:2x2x1
jax: 0.10.0
libtpu: 0.0.40
codegen_flags: <defaults>
</compile_context>

<pallas_src>
import jax
import jax.numpy as jnp
from jax.experimental import pallas as pl
from jax.experimental.pallas import tpu as pltpu


def _tanh_kernel(x_ref, o_ref):
    # f32 math (identity cast for f32 inputs; explicit upcast for low-precision).
    o_ref[...] = jnp.tanh(x_ref[...].astype(jnp.float32)).astype(o_ref.dtype)


_LANES = 128                           # lane width of the 2-D view (full vreg lane dim)
_TARGET_BLOCK_BYTES = 4 * 1024 * 1024  # ~4 MiB of payload per grid step
_SMALL_CUTOFF_BYTES = 256 * 1024       # below this: single-block, no pipeline
_MIN_TILE = 8 * 128                    # one f32 vreg worth of elements (pad granularity)


def _round_up(a, b):
    return ((a + b - 1) // b) * b


def _tanh_single_block(x_flat, n, orig_dtype):
    """Tiny-input path: the whole (vreg-padded) array as one VMEM block, no grid."""
    itemsize = jnp.dtype(orig_dtype).itemsize
    padded = _round_up(n, _MIN_TILE)
    if padded != n:
        x_flat = jnp.pad(x_flat, (0, padded - n))  # <= 1023 extra elements; negligible
    rows = padded // _LANES
    out2d = pl.pallas_call(
        _tanh_kernel,
        out_shape=jax.ShapeDtypeStruct((rows, _LANES), orig_dtype),
        cost_estimate=pl.CostEstimate(
            flops=0, transcendentals=padded, bytes_accessed=2 * padded * itemsize),
    )(x_flat.reshape(rows, _LANES))
    out_flat = out2d.reshape(padded)
    if padded != n:
        out_flat = out_flat[:n]
    return out_flat


def _tanh_tiled(x_flat, n, orig_dtype):
    """Large-input path: 1-D ragged grid of big lane-dense blocks, no pad/slice."""
    itemsize = jnp.dtype(orig_dtype).itemsize

    pad_to = _round_up(n, _LANES)
    if pad_to != n:
        # TODO(synk): rare case (large n not a multiple of 128) still pays one
        # pad + one slice copy; 128-aligned sizes (the common case) are copy-free.
        x_flat = jnp.pad(x_flat, (0, pad_to - n))
    rows = pad_to // _LANES

    # Block sizing: ~_TARGET_BLOCK_BYTES of payload per step (dtype-aware), row
    # count a multiple of 8 (sublane tiling), and always >= 2 grid steps so both
    # TensorCores on v7x get work.  The final block may be partial (ragged grid):
    # Pallas masks its OOB writes; stale OOB lanes feed tanh but are never stored.
    bytes_total = rows * _LANES * itemsize
    num_blocks = max(2, pl.cdiv(bytes_total, _TARGET_BLOCK_BYTES))
    block_rows = _round_up(pl.cdiv(rows, num_blocks), 8)
    if block_rows >= rows:
        block_rows = rows  # degenerate safety net: single full-extent block
    grid = (pl.cdiv(rows, block_rows),)

    out2d = pl.pallas_call(
        _tanh_kernel,
        out_shape=jax.ShapeDtypeStruct((rows, _LANES), orig_dtype),
        grid_spec=pltpu.PrefetchScalarGridSpec(
            num_scalar_prefetch=0,
            grid=grid,
            in_specs=[pl.BlockSpec((block_rows, _LANES), lambda i: (i, 0))],
            out_specs=pl.BlockSpec((block_rows, _LANES), lambda i: (i, 0)),
        ),
        compiler_params=pltpu.CompilerParams(
            dimension_semantics=("parallel",),      # shards grid across v7x's 2 TCs
            vmem_limit_bytes=32 * 1024 * 1024,      # 16 MiB working set + headroom
        ),
        cost_estimate=pl.CostEstimate(
            flops=0,
            transcendentals=rows * _LANES,
            bytes_accessed=2 * rows * _LANES * itemsize),
    )(x_flat.reshape(rows, _LANES))

    out_flat = out2d.reshape(pad_to)
    if pad_to != n:
        out_flat = out_flat[:n]
    return out_flat


def tanh_pallas(x: jax.Array) -> jax.Array:
    """Elementwise tanh, semantics identical to torch.tanh / tanhf per element."""
    orig_shape = x.shape
    orig_dtype = x.dtype
    n = x.size
    if n == 0:
        return x
    itemsize = jnp.dtype(orig_dtype).itemsize

    x_flat = jnp.ravel(x)
    if n * itemsize <= _SMALL_CUTOFF_BYTES:
        out_flat = _tanh_single_block(x_flat, n, orig_dtype)
    else:
        out_flat = _tanh_tiled(x_flat, n, orig_dtype)
    return out_flat.reshape(orig_shape)


if __name__ == "__main__":
    key = jax.random.PRNGKey(0)
    k1, k2, k3, k4 = jax.random.split(key, 4)

    # Primary case: small 4D tensor consistent with the module's forward.
    x = jax.random.normal(k1, (2, 4, 16, 16), dtype=jnp.float32)
    y = tanh_pallas(x)
    jax.block_until_ready(y)
    ref = jnp.tanh(x)
    assert y.shape == x.shape and y.dtype == x.dtype
    assert jnp.max(jnp.abs(y - ref)) < 1e-6

    # Small non-conforming shape (exercises the tiny-path pad/slice).
    x2 = jax.random.normal(k2, (3, 5, 7, 11), dtype=jnp.float32)
    y2 = tanh_pallas(x2)
    jax.block_until_ready(y2)
    assert y2.shape == x2.shape
    assert jnp.max(jnp.abs(y2 - jnp.tanh(x2))) < 1e-6

    # Larger 128-aligned shape: tiled pipelined path, ragged final block,
    # no input pad and no output slice.
    x3 = jax.random.normal(k3, (1337, 1024), dtype=jnp.float32)
    y3 = tanh_pallas(x3)
    jax.block_until_ready(y3)
    assert y3.shape == x3.shape
    assert jnp.max(jnp.abs(y3 - jnp.tanh(x3))) < 1e-6

    # Large non-128-multiple size (rare fallback: pad + slice).
    x4 = jax.random.normal(k4, (1048576 + 777,), dtype=jnp.float32)
    y4 = tanh_pallas(x4)
    jax.block_until_ready(y4)
    assert y4.shape == x4.shape
    assert jnp.max(jnp.abs(y4 - jnp.tanh(x4))) < 1e-6

    print("KERNEL_OK")
</pallas_src>

<mosaic_0001>
module attributes {stable_mosaic.version = 11 : i64} {
  func.func @_tanh_kernel(%arg0: memref<16x128xf32, #tpu.memory_space<vmem>>, %arg1: memref<16x128xf32, #tpu.memory_space<vmem>>) attributes {dimension_semantics = [], scalar_prefetch = 0 : i64, scratch_operands = 0 : i64, tpu.core_type = #tpu.core_type<tc>} {
    %c0 = arith.constant 0 : index
    %c0_0 = arith.constant 0 : index
    %0 = vector.load %arg0[%c0, %c0_0] : memref<16x128xf32, #tpu.memory_space<vmem>>, vector<16x128xf32>
    %1 = math.tanh %0 : vector<16x128xf32>
    %c0_1 = arith.constant 0 : index
    %c0_2 = arith.constant 0 : index
    %2 = vector.load %arg1[%c0_1, %c0_2] : memref<16x128xf32, #tpu.memory_space<vmem>>, vector<16x128xf32>
    tpu.vector_store %arg1[%c0_1, %c0_2], %1 {strides = array<i32>} : memref<16x128xf32, #tpu.memory_space<vmem>>, vector<16x128xf32>,
    return
  }
}

</mosaic_0001>

<llo_original>
// kernel: tpu_custom_call.1
$region0: #{tpu_custom_call.1}
  #allocation0 [shape = 'u32[]', space=smem, size = 0x4, offset = 0x4, fixed_abs, tag = 'smem constant byte address 0x4 - core index']
  #allocation1 [shape = 'u32[144,128]{1,0:T(1,128)}', space=vmem, size = 0x12000, scoped, tag = 'internal scratch']
  %s0 = inlined_call_operand.hbm [shape: f32[16,128], index: 0, kind: input, shape index: {}]
  %s1 = inlined_call_operand.hbm [shape: f32[16,128], index: 1, kind: output, shape index: {}]
  %s2 = sld [smem:[#allocation0]]
  $region18: #{tpu_custom_call.1} parent=0
    _
  %s4 = ssub.s32 1, %s2
  %s5 = scalar_select 0, %s4, %s2
  $region1: #{tpu_custom_call.1} parent=0
    #allocation2 [shape = 'u8[8192]{0}', space=vmem, size = 0x2000, scoped, tag = 'input window, operand 0, single buffered']
    #allocation3 [shape = 's32[1]{0}', space=sflag, size = 0x4, scoped, tag = 'scoped memory for tpu_custom_call.1']
    #allocation4 [shape = 's32[1]{0}', space=sflag, size = 0x4, scoped, tag = 'scoped memory for tpu_custom_call.1']
    #allocation5 [shape = 'u8[8192]{0}', space=vmem, size = 0x2000, scoped, tag = 'output window, operand 0, single buffered']
    %6 = vsyncpa [#allocation3], 0
    %7 = vsyncpa [#allocation4], 0
    // Predicated region
    $region2: #{tpu_custom_call.1} parent=1 // pred_check
      _
    $region3: #{tpu_custom_call.1} parent=1 // pred_check_branch
      %9 = sbr.rel (0) target = $region5
    $region4: #{tpu_custom_call.1} parent=1 // pred_region
      %s11 = ssub.s32 256, 256
      %12 = vsyncadd [#allocation3], %s11
      %s13 = sshll.u32 [#allocation2], 4
      %s14 = int_to_ptr.vmem [resolvable:$true] %s13
      %19 = dma.hbm_to_vmem [thread:$0]  %s0, 256, %s14, [#allocation3], 128, 128, 8
    $region5: #{tpu_custom_call.1} parent=1 // pred_fallthru
      _
    // Predicated region
    $region6: #{tpu_custom_call.1} parent=1 // pred_check
      _
    $region7: #{tpu_custom_call.1} parent=1 // pred_check_branch
      %21 = sbr.rel (0) target = $region9
    $region8: #{tpu_custom_call.1} parent=1 // pred_region
      %22 = dma.done [#allocation3], 256
    $region9: #{tpu_custom_call.1} parent=1 // pred_fallthru
      _
    %v23 = vld [vmem:[#allocation2] sm:$0xff]
    %v24 = vld [vmem:[#allocation2 + $0x8] sm:$0xff]
    %v25 = vtanh.pop %v23
    %v26 = vtanh.pop %v24
    %27 = vst [vmem:[#allocation5] sm:$0xff] %v25
    %28 = vst [vmem:[#allocation5 + $0x8] sm:$0xff] %v26
    // Predicated region
    $region10: #{tpu_custom_call.1} parent=1 // pred_check
      _
    $region11: #{tpu_custom_call.1} parent=1 // pred_check_branch
      %30 = sbr.rel (0) target = $region13
    $region12: #{tpu_custom_call.1} parent=1 // pred_region
      %s32 = ssub.s32 256, 256
      %33 = vsyncadd [#allocation4], %s32
      %s34 = sshll.u32 [#allocation5], 4
      %s35 = int_to_ptr.vmem [resolvable:$true] %s34
      %40 = dma.vmem_to_hbm [thread:$0]  %s35, 256, %s1, [#allocation4], 128, 128, 8
    $region13: #{tpu_custom_call.1} parent=1 // pred_fallthru
      _
    // Predicated region
    $region14: #{tpu_custom_call.1} parent=1 // pred_check
      _
    $region15: #{tpu_custom_call.1} parent=1 // pred_check_branch
      %42 = sbr.rel (0) target = $region17
    $region16: #{tpu_custom_call.1} parent=1 // pred_region
      %43 = dma.done [#allocation4], 256
    $region17: #{tpu_custom_call.1} parent=1 // pred_fallthru
      _
    %44 = vsyncpa [#allocation3], 1
    %45 = vsyncpa [#allocation4], 1

</llo_original>
